<compile_context>
chip_gen: v6e
topology: v6e:2x2x1
jax: 0.10.0
libtpu: 0.0.40
codegen_flags: <defaults>
</compile_context>

<pallas_src>
import functools

import jax
import jax.numpy as jnp
from jax.experimental import pallas as pl
from jax.experimental.pallas import tpu as pltpu


def _decoder_kernel(x_ref, w1_ref, b1_ref, w2_ref, b2_ref, w3_ref, b3_ref,
                    o_ref, *, slope):
    x = x_ref[...].astype(jnp.float32)

    h = jnp.dot(x, w1_ref[...].astype(jnp.float32),
                preferred_element_type=jnp.float32) + b1_ref[...]
    h = jnp.where(h >= 0, h, slope * h)          # LeakyReLU(0.2) on VPU

    h = jnp.dot(h, w2_ref[...].astype(jnp.float32),
                preferred_element_type=jnp.float32) + b2_ref[...]
    h = jnp.where(h >= 0, h, slope * h)

    y = jnp.dot(h, w3_ref[...].astype(jnp.float32),
                preferred_element_type=jnp.float32) + b3_ref[...]
    o_ref[...] = y.astype(o_ref.dtype)


def build_decoder_forward(x, w1, b1, w2, b2, w3, b3, *,
                          negative_slope=0.2, row_tile=256):
    """Pallas TPU implementation of build_Decoder.forward.

    x:  (B, latent_dim)
    w1: (hidden_dim, latent_dim), b1: (hidden_dim,)   [PyTorch Linear layout]
    w2: (hidden_dim, hidden_dim), b2: (hidden_dim,)
    w3: (output_dim, hidden_dim), b3: (output_dim,)
    returns: (B, output_dim)
    """
    B, latent = x.shape
    hidden = w1.shape[0]
    out_dim = w3.shape[0]

    # PyTorch Linear stores W as (out, in); transpose once so the kernel does
    # a plain x @ W with a lane-dense output dimension.
    w1t = jnp.asarray(w1).T                      # (latent, hidden)
    w2t = jnp.asarray(w2).T                      # (hidden, hidden)
    w3t = jnp.asarray(w3).T                      # (hidden, out_dim)
    b1r = jnp.asarray(b1).reshape(1, hidden)
    b2r = jnp.asarray(b2).reshape(1, hidden)
    b3r = jnp.asarray(b3).reshape(1, out_dim)

    # Row tile: multiple of 8 (sublane); pad batch up to a tile multiple only.
    tm = min(int(row_tile), pl.cdiv(B, 8) * 8)
    padded_b = pl.cdiv(B, tm) * tm
    xp = x if padded_b == B else jnp.pad(x, ((0, padded_b - B), (0, 0)))
    grid = (padded_b // tm,)

    kernel = functools.partial(_decoder_kernel, slope=float(negative_slope))

    flops = 2 * padded_b * (latent * hidden + hidden * hidden
                            + hidden * out_dim) + 4 * padded_b * hidden
    bytes_accessed = 4 * (padded_b * (latent + out_dim)
                          + latent * hidden + hidden * hidden
                          + hidden * out_dim + 2 * hidden + out_dim)

    out = pl.pallas_call(
        kernel,
        out_shape=jax.ShapeDtypeStruct((padded_b, out_dim), x.dtype),
        grid_spec=pltpu.PrefetchScalarGridSpec(
            num_scalar_prefetch=0,
            grid=grid,
            in_specs=[
                pl.BlockSpec((tm, latent), lambda i: (i, 0)),   # x tile
                pl.BlockSpec((latent, hidden), lambda i: (0, 0)),  # W1^T (resident)
                pl.BlockSpec((1, hidden), lambda i: (0, 0)),       # b1
                pl.BlockSpec((hidden, hidden), lambda i: (0, 0)),  # W2^T (resident)
                pl.BlockSpec((1, hidden), lambda i: (0, 0)),       # b2
                pl.BlockSpec((hidden, out_dim), lambda i: (0, 0)), # W3^T (resident)
                pl.BlockSpec((1, out_dim), lambda i: (0, 0)),      # b3
            ],
            out_specs=pl.BlockSpec((tm, out_dim), lambda i: (i, 0)),
        ),
        compiler_params=pltpu.CompilerParams(
            dimension_semantics=("parallel",)),
        cost_estimate=pl.CostEstimate(flops=flops, transcendentals=0,
                                      bytes_accessed=bytes_accessed),
    )(xp, w1t, b1r, w2t, b2r, w3t, b3r)
    return out[:B]


def _reference(x, w1, b1, w2, b2, w3, b3, slope=0.2):
    h = x @ w1.T + b1
    h = jnp.where(h >= 0, h, slope * h)
    h = h @ w2.T + b2
    h = jnp.where(h >= 0, h, slope * h)
    return h @ w3.T + b3


if __name__ == "__main__":
    key = jax.random.PRNGKey(0)
    B, latent_dim, hidden_dim, output_dim = 2, 8, 32, 16
    k = jax.random.split(key, 7)

    x = jax.random.normal(k[0], (B, latent_dim), dtype=jnp.float32)
    w1 = jax.random.normal(k[1], (hidden_dim, latent_dim), jnp.float32) * 0.1
    b1 = jax.random.normal(k[2], (hidden_dim,), jnp.float32) * 0.1
    w2 = jax.random.normal(k[3], (hidden_dim, hidden_dim), jnp.float32) * 0.1
    b2 = jax.random.normal(k[4], (hidden_dim,), jnp.float32) * 0.1
    w3 = jax.random.normal(k[5], (output_dim, hidden_dim), jnp.float32) * 0.1
    b3 = jax.random.normal(k[6], (output_dim,), jnp.float32) * 0.1

    out = jax.block_until_ready(
        build_decoder_forward(x, w1, b1, w2, b2, w3, b3))
    ref = jax.block_until_ready(_reference(x, w1, b1, w2, b2, w3, b3))

    assert out.shape == (B, output_dim), out.shape
    assert jnp.allclose(out, ref, atol=1e-5, rtol=1e-5), (out, ref)
    print("KERNEL_OK")
</pallas_src>

<mosaic_0001>
module attributes {stable_mosaic.version = 11 : i64} {
  func.func @_decoder_kernel(%arg0: i32, %arg1: memref<8x8xf32, #tpu.memory_space<vmem>>, %arg2: memref<8x32xf32, #tpu.memory_space<vmem>>, %arg3: memref<1x32xf32, #tpu.memory_space<vmem>>, %arg4: memref<32x32xf32, #tpu.memory_space<vmem>>, %arg5: memref<1x32xf32, #tpu.memory_space<vmem>>, %arg6: memref<32x16xf32, #tpu.memory_space<vmem>>, %arg7: memref<1x16xf32, #tpu.memory_space<vmem>>, %arg8: memref<8x16xf32, #tpu.memory_space<vmem>>) attributes {dimension_semantics = [#tpu.dimension_semantics<parallel>], iteration_bounds = array<i64: 1>, scalar_prefetch = 0 : i64, scratch_operands = 0 : i64, tpu.core_type = #tpu.core_type<tc>, window_params = [{transform_indices = @transform_0, window_bounds = array<i64: 8, 8>}, {pipeline_mode = #tpu.pipeline_mode<synchronous>, transform_indices = @transform_1, window_bounds = array<i64: 8, 32>}, {pipeline_mode = #tpu.pipeline_mode<synchronous>, transform_indices = @transform_2, window_bounds = array<i64: 1, 32>}, {pipeline_mode = #tpu.pipeline_mode<synchronous>, transform_indices = @transform_3, window_bounds = array<i64: 32, 32>}, {pipeline_mode = #tpu.pipeline_mode<synchronous>, transform_indices = @transform_4, window_bounds = array<i64: 1, 32>}, {pipeline_mode = #tpu.pipeline_mode<synchronous>, transform_indices = @transform_5, window_bounds = array<i64: 32, 16>}, {pipeline_mode = #tpu.pipeline_mode<synchronous>, transform_indices = @transform_6, window_bounds = array<i64: 1, 16>}, {transform_indices = @transform_7, window_bounds = array<i64: 8, 16>}]} {
    %c0 = arith.constant 0 : index
    %c0_0 = arith.constant 0 : index
    %0 = vector.load %arg1[%c0, %c0_0] : memref<8x8xf32, #tpu.memory_space<vmem>>, vector<8x8xf32>
    %c0_1 = arith.constant 0 : index
    %c0_2 = arith.constant 0 : index
    %1 = vector.load %arg2[%c0_1, %c0_2] : memref<8x32xf32, #tpu.memory_space<vmem>>, vector<8x32xf32>
    %cst = arith.constant dense<0.000000e+00> : vector<8x32xf32>
    %2 = tpu.matmul %0, %1, %cst {dimension_numbers = #tpu.dot_dimension_numbers<[1], [0], [0], [1], [0, 0, 1, 1], [], []>} : vector<8x8xf32>, vector<8x32xf32>, vector<8x32xf32> -> vector<8x32xf32>
    %c0_3 = arith.constant 0 : index
    %c0_4 = arith.constant 0 : index
    %3 = vector.load %arg3[%c0_3, %c0_4] : memref<1x32xf32, #tpu.memory_space<vmem>>, vector<1x32xf32>
    %4 = vector.broadcast %3 : vector<1x32xf32> to vector<8x32xf32>
    %5 = arith.addf %2, %4 : vector<8x32xf32>
    %cst_5 = arith.constant 0.000000e+00 : f32
    %6 = vector.broadcast %cst_5 : f32 to vector<8x32xf32>
    %7 = arith.cmpf oge, %5, %6 : vector<8x32xf32>
    %cst_6 = arith.constant 2.000000e-01 : f32
    %8 = vector.broadcast %cst_6 : f32 to vector<8x32xf32>
    %9 = arith.mulf %8, %5 : vector<8x32xf32>
    %10 = arith.select %7, %5, %9 : vector<8x32xi1>, vector<8x32xf32>
    %c0_7 = arith.constant 0 : index
    %c0_8 = arith.constant 0 : index
    %11 = vector.load %arg4[%c0_7, %c0_8] : memref<32x32xf32, #tpu.memory_space<vmem>>, vector<32x32xf32>
    %cst_9 = arith.constant dense<0.000000e+00> : vector<8x32xf32>
    %12 = tpu.matmul %10, %11, %cst_9 {dimension_numbers = #tpu.dot_dimension_numbers<[1], [0], [0], [1], [0, 0, 1, 1], [], []>} : vector<8x32xf32>, vector<32x32xf32>, vector<8x32xf32> -> vector<8x32xf32>
    %c0_10 = arith.constant 0 : index
    %c0_11 = arith.constant 0 : index
    %13 = vector.load %arg5[%c0_10, %c0_11] : memref<1x32xf32, #tpu.memory_space<vmem>>, vector<1x32xf32>
    %14 = vector.broadcast %13 : vector<1x32xf32> to vector<8x32xf32>
    %15 = arith.addf %12, %14 : vector<8x32xf32>
    %cst_12 = arith.constant 0.000000e+00 : f32
    %16 = vector.broadcast %cst_12 : f32 to vector<8x32xf32>
    %17 = arith.cmpf oge, %15, %16 : vector<8x32xf32>
    %cst_13 = arith.constant 2.000000e-01 : f32
    %18 = vector.broadcast %cst_13 : f32 to vector<8x32xf32>
    %19 = arith.mulf %18, %15 : vector<8x32xf32>
    %20 = arith.select %17, %15, %19 : vector<8x32xi1>, vector<8x32xf32>
    %c0_14 = arith.constant 0 : index
    %c0_15 = arith.constant 0 : index
    %21 = vector.load %arg6[%c0_14, %c0_15] : memref<32x16xf32, #tpu.memory_space<vmem>>, vector<32x16xf32>
    %cst_16 = arith.constant dense<0.000000e+00> : vector<8x16xf32>
    %22 = tpu.matmul %20, %21, %cst_16 {dimension_numbers = #tpu.dot_dimension_numbers<[1], [0], [0], [1], [0, 0, 1, 1], [], []>} : vector<8x32xf32>, vector<32x16xf32>, vector<8x16xf32> -> vector<8x16xf32>
    %c0_17 = arith.constant 0 : index
    %c0_18 = arith.constant 0 : index
    %23 = vector.load %arg7[%c0_17, %c0_18] : memref<1x16xf32, #tpu.memory_space<vmem>>, vector<1x16xf32>
    %24 = vector.broadcast %23 : vector<1x16xf32> to vector<8x16xf32>
    %25 = arith.addf %22, %24 : vector<8x16xf32>
    %c0_19 = arith.constant 0 : index
    %c0_20 = arith.constant 0 : index
    %26 = vector.load %arg8[%c0_19, %c0_20] : memref<8x16xf32, #tpu.memory_space<vmem>>, vector<8x16xf32>
    tpu.vector_store %arg8[%c0_19, %c0_20], %25 {strides = array<i32>} : memref<8x16xf32, #tpu.memory_space<vmem>>, vector<8x16xf32>,
    return
  }
  func.func @transform_0(%arg0: i32) -> (i32, i32) {
    %c0_i32 = arith.constant 0 : i32
    %c0_i32_0 = arith.constant 0 : i32
    return %arg0, %c0_i32 : i32, i32
  }
  func.func @transform_1(%arg0: i32) -> (i32, i32) {
    %c0_i32 = arith.constant 0 : i32
    %c0_i32_0 = arith.constant 0 : i32
    %c0_i32_1 = arith.constant 0 : i32
    return %c0_i32, %c0_i32_0 : i32, i32
  }
  func.func @transform_2(%arg0: i32) -> (i32, i32) {
    %c0_i32 = arith.constant 0 : i32
    %c0_i32_0 = arith.constant 0 : i32
    %c0_i32_1 = arith.constant 0 : i32
    return %c0_i32, %c0_i32_0 : i32, i32
  }
  func.func @transform_3(%arg0: i32) -> (i32, i32) {
    %c0_i32 = arith.constant 0 : i32
    %c0_i32_0 = arith.constant 0 : i32
    %c0_i32_1 = arith.constant 0 : i32
    return %c0_i32, %c0_i32_0 : i32, i32
  }
  func.func @transform_4(%arg0: i32) -> (i32, i32) {
    %c0_i32 = arith.constant 0 : i32
    %c0_i32_0 = arith.constant 0 : i32
    %c0_i32_1 = arith.constant 0 : i32
    return %c0_i32, %c0_i32_0 : i32, i32
  }
  func.func @transform_5(%arg0: i32) -> (i32, i32) {
    %c0_i32 = arith.constant 0 : i32
    %c0_i32_0 = arith.constant 0 : i32
    %c0_i32_1 = arith.constant 0 : i32
    return %c0_i32, %c0_i32_0 : i32, i32
  }
  func.func @transform_6(%arg0: i32) -> (i32, i32) {
    %c0_i32 = arith.constant 0 : i32
    %c0_i32_0 = arith.constant 0 : i32
    %c0_i32_1 = arith.constant 0 : i32
    return %c0_i32, %c0_i32_0 : i32, i32
  }
  func.func @transform_7(%arg0: i32) -> (i32, i32) {
    %c0_i32 = arith.constant 0 : i32
    %c0_i32_0 = arith.constant 0 : i32
    return %arg0, %c0_i32 : i32, i32
  }
}

</mosaic_0001>

<llo_original>
// kernel: tpu_custom_call.1
$region0: #{tpu_custom_call.1}
  #allocation0 [shape = 'u32[]', space=smem, size = 0x4, offset = 0x4, fixed_abs, tag = 'smem constant byte address 0x4 - core index']
  #allocation1 [shape = 'u32[144,128]{1,0:T(1,128)}', space=vmem, size = 0x12000, scoped, tag = 'internal scratch']
  %s0 = inlined_call_operand.vmem [shape: f32[8,8], index: 0, kind: input, shape index: {}]
  %s1 = inlined_call_operand.vmem [shape: f32[8,32], index: 1, kind: input, shape index: {}]
  %s2 = inlined_call_operand.vmem [shape: f32[1,32], index: 2, kind: input, shape index: {}]
  %s3 = inlined_call_operand.vmem [shape: f32[32,32], index: 3, kind: input, shape index: {}]
  %s4 = inlined_call_operand.vmem [shape: f32[1,32], index: 4, kind: input, shape index: {}]
  %s5 = inlined_call_operand.vmem [shape: f32[32,16], index: 5, kind: input, shape index: {}]
  %s6 = inlined_call_operand.vmem [shape: f32[1,16], index: 6, kind: input, shape index: {}]
  %s7 = inlined_call_operand.hbm [shape: f32[8,16], index: 7, kind: output, shape index: {}]
  %s8 = sld [smem:[#allocation0]]
  $region38: #{tpu_custom_call.1} parent=0
    _
  %s10 = ssub.s32 1, %s8
  %s11 = scalar_select 0, %s10, %s8
  $region1: #{tpu_custom_call.1} parent=0
    #allocation2 [shape = 'u8[4096]{0}', space=vmem, size = 0x1000, scoped, tag = 'output window, operand 0, single buffered']
    #allocation3 [shape = 's32[1]{0}', space=sflag, size = 0x4, scoped, tag = 'scoped memory for tpu_custom_call.1']
    %12 = vsyncpa [#allocation3], 0
    // Predicated region
    $region2: #{tpu_custom_call.1} parent=1 // pred_check
      _
    $region3: #{tpu_custom_call.1} parent=1 // pred_check_branch
      %14 = sbr.rel (0) target = $region5
    $region4: #{tpu_custom_call.1} parent=1 // pred_region
      _
    $region5: #{tpu_custom_call.1} parent=1 // pred_fallthru
      _
    // Predicated region
    $region6: #{tpu_custom_call.1} parent=1 // pred_check
      _
    $region7: #{tpu_custom_call.1} parent=1 // pred_check_branch
      %16 = sbr.rel (0) target = $region9
    $region8: #{tpu_custom_call.1} parent=1 // pred_region
      _
    $region9: #{tpu_custom_call.1} parent=1 // pred_fallthru
      _
    // Predicated region
    $region10: #{tpu_custom_call.1} parent=1 // pred_check
      _
    $region11: #{tpu_custom_call.1} parent=1 // pred_check_branch
      %18 = sbr.rel (0) target = $region13
    $region12: #{tpu_custom_call.1} parent=1 // pred_region
      _
    $region13: #{tpu_custom_call.1} parent=1 // pred_fallthru
      _
    // Predicated region
    $region14: #{tpu_custom_call.1} parent=1 // pred_check
      _
    $region15: #{tpu_custom_call.1} parent=1 // pred_check_branch
      %20 = sbr.rel (0) target = $region17
    $region16: #{tpu_custom_call.1} parent=1 // pred_region
      _
    $region17: #{tpu_custom_call.1} parent=1 // pred_fallthru
      _
    // Predicated region
    $region18: #{tpu_custom_call.1} parent=1 // pred_check
      _
    $region19: #{tpu_custom_call.1} parent=1 // pred_check_branch
      %22 = sbr.rel (0) target = $region21
    $region20: #{tpu_custom_call.1} parent=1 // pred_region
      _
    $region21: #{tpu_custom_call.1} parent=1 // pred_fallthru
      _
    // Predicated region
    $region22: #{tpu_custom_call.1} parent=1 // pred_check
      _
    $region23: #{tpu_custom_call.1} parent=1 // pred_check_branch
      %24 = sbr.rel (0) target = $region25
    $region24: #{tpu_custom_call.1} parent=1 // pred_region
      _
    $region25: #{tpu_custom_call.1} parent=1 // pred_fallthru
      _
    // Predicated region
    $region26: #{tpu_custom_call.1} parent=1 // pred_check
      _
    $region27: #{tpu_custom_call.1} parent=1 // pred_check_branch
      %26 = sbr.rel (0) target = $region29
    $region28: #{tpu_custom_call.1} parent=1 // pred_region
      _
    $region29: #{tpu_custom_call.1} parent=1 // pred_fallthru
      _
    %v27 = vld [vmem:[%s0] sm:$0xff]
    %v28 = vld [vmem:[%s1] sm:$0xff]
    %v29 = vld [vmem:[%s2] sm:$0x1]
    %v31 = vlaneseq
    %v32 = vshrl.u32 %v31, 7
    %v33 = vsub.s32 0, %v32
    %v34 = vrot.slane %v29, %v33
    %vm36 = vcmask 64512
    %v38 = vsel %vm36, %v27, 0
    %40 = vmatprep.subr.mxu0 0.0
    %41 = vmatpush1.msra.mxu0 0.0
    %42 = vmatprep.subr.mxu0 0.0
    %43 = vmatpush1.msra.mxu0 0.0
    %44 = vmatprep.subr.mxu0 0.0
    %45 = vmatpush1.msra.mxu0 0.0
    %46 = vmatprep.subr.mxu0 0.0
    %47 = vmatpush1.msra.mxu0 0.0
    %48 = vmatprep.subr.mxu0 0.0
    %49 = vmatpush1.msra.mxu0 0.0
    %50 = vmatprep.subr.mxu0 0.0
    %51 = vmatpush1.msra.mxu0 0.0
    %52 = vmatprep.subr.mxu0 0.0
    %53 = vmatpush1.msra.mxu0 0.0
    %54 = vmatprep.subr.mxu0 0.0
    %55 = vmatpush1.msra.mxu0 0.0
    %56 = vmatprep.subr.mxu0 0.0
    %57 = vmatpush1.msra.mxu0 0.0
    %58 = vmatprep.subr.mxu0 0.0
    %59 = vmatpush1.msra.mxu0 0.0
    %60 = vmatprep.subr.mxu0 0.0
    %61 = vmatpush1.msra.mxu0 0.0
    %62 = vmatprep.subr.mxu0 0.0
    %63 = vmatpush1.msra.mxu0 0.0
    %64 = vmatprep.subr.mxu0 0.0
    %65 = vmatpush1.msra.mxu0 0.0
    %66 = vmatprep.subr.mxu0 0.0
    %67 = vmatpush1.msra.mxu0 0.0
    %68 = vmatprep.subr.mxu0 0.0
    %69 = vmatpush1.msra.mxu0 0.0
    %70 = vmatprep.subr.mxu0 0.0
    %71 = vmatpush1.msra.mxu0 %v28
    %72 = vmatprep.subr.mxu0 0.0
    %73 = vmatpush2.msra.mxu0 0.0
    %74 = vmatprep.subr.mxu0 0.0
    %75 = vmatpush2.msra.mxu0 0.0
    %76 = vmatprep.subr.mxu0 0.0
    %77 = vmatpush2.msra.mxu0 0.0
    %78 = vmatprep.subr.mxu0 0.0
    %79 = vmatpush2.msra.mxu0 0.0
    %80 = vmatprep.subr.mxu0 0.0
    %81 = vmatpush2.msra.mxu0 0.0
    %82 = vmatprep.subr.mxu0 0.0
    %83 = vmatpush2.msra.mxu0 0.0
    %84 = vmatprep.subr.mxu0 0.0
    %85 = vmatpush2.msra.mxu0 0.0
    %86 = vmatprep.subr.mxu0 0.0
    %87 = vmatpush2.msra.mxu0 0.0
    %88 = vmatprep.subr.mxu0 0.0
    %89 = vmatpush2.msra.mxu0 0.0
    %90 = vmatprep.subr.mxu0 0.0
    %91 = vmatpush2.msra.mxu0 0.0
    %92 = vmatprep.subr.mxu0 0.0
    %93 = vmatpush2.msra.mxu0 0.0
    %94 = vmatprep.subr.mxu0 0.0
    %95 = vmatpush2.msra.mxu0 0.0
    %96 = vmatprep.subr.mxu0 0.0
    %97 = vmatpush2.msra.mxu0 0.0
    %98 = vmatprep.subr.mxu0 0.0
    %99 = vmatpush2.msra.mxu0 0.0
    %100 = vmatprep.subr.mxu0 0.0
    %101 = vmatpush2.msra.mxu0 0.0
    %102 = vmatprep.subr.mxu0 0.0
    %103 = vmatpush2.msra.mxu0 0.0
    %104 = vmatprep.mubr.f32.mxu0 0.0
    %105 = vmatmul.mubr.f32.gmra.mxu0 %v38
    %v106 = vpop.f32.mrf.mxu0
    %v107 = vadd.f32 %v34, %v106
    %v108 = vpop.f32.mrf.mxu0
    %109 = vdwg.mxu0
    %vm110 = vcmp.ge.f32.partialorder %v107, 0.0
    %v111 = vmul.f32 %v107, 0.2
    %v112 = vsel %vm110, %v107, %v111
    %v113 = vld [vmem:[%s3] sm:$0xff]
    %v114 = vld [vmem:[%s3 + $0x8] sm:$0xff]
    %v115 = vld [vmem:[%s3 + $0x10] sm:$0xff]
    %v116 = vld [vmem:[%s3 + $0x18] sm:$0xff]
    %v117 = vld [vmem:[%s4] sm:$0x1]
    %v119 = vlaneseq
    %v120 = vshrl.u32 %v119, 7
    %v121 = vsub.s32 0, %v120
    %v122 = vrot.slane %v117, %v121
    %vm124 = vcmask 261120
    %v126 = vsel %vm124, %v112, 0
    %128 = vmatprep.subr.mxu0 0.0
    %129 = vmatpush1.msra.mxu0 0.0
    %130 = vmatprep.subr.mxu0 0.0
    %131 = vmatpush1.msra.mxu0 0.0
    %132 = vmatprep.subr.mxu0 0.0
    %133 = vmatpush1.msra.mxu0 0.0
    %134 = vmatprep.subr.mxu0 0.0
    %135 = vmatpush1.msra.mxu0 0.0
    %136 = vmatprep.subr.mxu0 0.0
    %137 = vmatpush1.msra.mxu0 0.0
    %138 = vmatprep.subr.mxu0 0.0
    %139 = vmatpush1.msra.mxu0 0.0
    %140 = vmatprep.subr.mxu0 0.0
    %141 = vmatpush1.msra.mxu0 0.0
    %142 = vmatprep.subr.mxu0 0.0
    %143 = vmatpush1.msra.mxu0 0.0
    %144 = vmatprep.subr.mxu0 0.0
    %145 = vmatpush1.msra.mxu0 0.0
    %146 = vmatprep.subr.mxu0 0.0
    %147 = vmatpush1.msra.mxu0 0.0
    %148 = vmatprep.subr.mxu0 0.0
    %149 = vmatpush1.msra.mxu0 0.0
    %150 = vmatprep.subr.mxu0 0.0
    %151 = vmatpush1.msra.mxu0 0.0
    %152 = vmatprep.subr.mxu0 0.0
    %153 = vmatpush1.msra.mxu0 %v116
    %154 = vmatprep.subr.mxu0 0.0
    %155 = vmatpush1.msra.mxu0 %v115
    %156 = vmatprep.subr.mxu0 0.0
    %157 = vmatpush1.msra.mxu0 %v114
    %158 = vmatprep.subr.mxu0 0.0
    %159 = vmatpush1.msra.mxu0 %v113
    %160 = vmatprep.subr.mxu0 0.0
    %161 = vmatpush2.msra.mxu0 0.0
    %162 = vmatprep.subr.mxu0 0.0
    %163 = vmatpush2.msra.mxu0 0.0
    %164 = vmatprep.subr.mxu0 0.0
    %165 = vmatpush2.msra.mxu0 0.0
    %166 = vmatprep.subr.mxu0 0.0
    %167 = vmatpush2.msra.mxu0 0.0
    %168 = vmatprep.subr.mxu0 0.0
    %169 = vmatpush2.msra.mxu0 0.0
    %170 = vmatprep.subr.mxu0 0.0
    %171 = vmatpush2.msra.mxu0 0.0
    %172 = vmatprep.subr.mxu0 0.0
    %173 = vmatpush2.msra.mxu0 0.0
    %174 = vmatprep.subr.mxu0 0.0
    %175 = vmatpush2.msra.mxu0 0.0
    %176 = vmatprep.subr.mxu0 0.0
    %177 = vmatpush2.msra.mxu0 0.0
    %178 = vmatprep.subr.mxu0 0.0
    %179 = vmatpush2.msra.mxu0 0.0
    %180 = vmatprep.subr.mxu0 0.0
    %181 = vmatpush2.msra.mxu0 0.0
    %182 = vmatprep.subr.mxu0 0.0
    %183 = vmatpush2.msra.mxu0 0.0
    %184 = vmatprep.subr.mxu0 0.0
    %185 = vmatpush2.msra.mxu0 0.0
    %186 = vmatprep.subr.mxu0 0.0
    %187 = vmatpush2.msra.mxu0 0.0
    %188 = vmatprep.subr.mxu0 0.0
    %189 = vmatpush2.msra.mxu0 0.0
    %190 = vmatprep.subr.mxu0 0.0
    %191 = vmatpush2.msra.mxu0 0.0
    %192 = vmatprep.mubr.f32.mxu0 0.0
    %193 = vmatmul.mubr.f32.gmra.mxu0 %v126
    %v194 = vpop.f32.mrf.mxu0
    %v195 = vadd.f32 %v122, %v194
    %v196 = vpop.f32.mrf.mxu0
    %197 = vdwg.mxu0
    %vm198 = vcmp.ge.f32.partialorder %v195, 0.0
    %v199 = vmul.f32 %v195, 0.2
    %v200 = vsel %vm198, %v195, %v199
    %v201 = vld [vmem:[%s5] sm:$0xff]
    %v202 = vld [vmem:[%s5 + $0x8] sm:$0xff]
    %v203 = vld [vmem:[%s5 + $0x10] sm:$0xff]
    %v204 = vld [vmem:[%s5 + $0x18] sm:$0xff]
    %v205 = vld [vmem:[%s6] sm:$0x1]
    %v207 = vlaneseq
    %v208 = vshrl.u32 %v207, 7
    %v209 = vsub.s32 0, %v208
    %v210 = vrot.slane %v205, %v209
    %v213 = vsel %vm124, %v200, 0
    %215 = vmatprep.subr.mxu0 0.0
    %216 = vmatpush1.msra.mxu0 0.0
    %217 = vmatprep.subr.mxu0 0.0
    %218 = vmatpush1.msra.mxu0 0.0
    %219 = vmatprep.subr.mxu0 0.0
    %220 = vmatpush1.msra.mxu0 0.0
    %221 = vmatprep.subr.mxu0 0.0
    %222 = vmatpush1.msra.mxu0 0.0
    %223 = vmatprep.subr.mxu0 0.0
    %224 = vmatpush1.msra.mxu0 0.0
    %225 = vmatprep.subr.mxu0 0.0
    %226 = vmatpush1.msra.mxu0 0.0
    %227 = vmatprep.subr.mxu0 0.0
    %228 = vmatpush1.msra.mxu0 0.0
    %229 = vmatprep.subr.mxu0 0.0
    %230 = vmatpush1.msra.mxu0 0.0
    %231 = vmatprep.subr.mxu0 0.0
    %232 = vmatpush1.msra.mxu0 0.0
    %233 = vmatprep.subr.mxu0 0.0
    %234 = vmatpush1.msra.mxu0 0.0
    %235 = vmatprep.subr.mxu0 0.0
    %236 = vmatpush1.msra.mxu0 0.0
    %237 = vmatprep.subr.mxu0 0.0
    %238 = vmatpush1.msra.mxu0 0.0
    %239 = vmatprep.subr.mxu0 0.0
    %240 = vmatpush1.msra.mxu0 %v204
    %241 = vmatprep.subr.mxu0 0.0
    %242 = vmatpush1.msra.mxu0 %v203
    %243 = vmatprep.subr.mxu0 0.0
    %244 = vmatpush1.msra.mxu0 %v202
    %245 = vmatprep.subr.mxu0 0.0
    %246 = vmatpush1.msra.mxu0 %v201
    %247 = vmatprep.subr.mxu0 0.0
    %248 = vmatpush2.msra.mxu0 0.0
    %249 = vmatprep.subr.mxu0 0.0
    %250 = vmatpush2.msra.mxu0 0.0
    %251 = vmatprep.subr.mxu0 0.0
    %252 = vmatpush2.msra.mxu0 0.0
    %253 = vmatprep.subr.mxu0 0.0
    %254 = vmatpush2.msra.mxu0 0.0
    %255 = vmatprep.subr.mxu0 0.0
    %256 = vmatpush2.msra.mxu0 0.0
    %257 = vmatprep.subr.mxu0 0.0
    %258 = vmatpush2.msra.mxu0 0.0
    %259 = vmatprep.subr.mxu0 0.0
    %260 = vmatpush2.msra.mxu0 0.0
    %261 = vmatprep.subr.mxu0 0.0
    %262 = vmatpush2.msra.mxu0 0.0
    %263 = vmatprep.subr.mxu0 0.0
    %264 = vmatpush2.msra.mxu0 0.0
    %265 = vmatprep.subr.mxu0 0.0
    %266 = vmatpush2.msra.mxu0 0.0
    %267 = vmatprep.subr.mxu0 0.0
    %268 = vmatpush2.msra.mxu0 0.0
    %269 = vmatprep.subr.mxu0 0.0
    %270 = vmatpush2.msra.mxu0 0.0
    %271 = vmatprep.subr.mxu0 0.0
    %272 = vmatpush2.msra.mxu0 0.0
    %273 = vmatprep.subr.mxu0 0.0
    %274 = vmatpush2.msra.mxu0 0.0
    %275 = vmatprep.subr.mxu0 0.0
    %276 = vmatpush2.msra.mxu0 0.0
    %277 = vmatprep.subr.mxu0 0.0
    %278 = vmatpush2.msra.mxu0 0.0
    %279 = vmatprep.mubr.f32.mxu0 0.0
    %280 = vmatmul.mubr.f32.gmra.mxu0 %v213
    %v281 = vpop.f32.mrf.mxu0
    %v282 = vadd.f32 %v210, %v281
    %v283 = vpop.f32.mrf.mxu0
    %284 = vdwg.mxu0
    %vm285 = vcmask 130048
    %286 = vst.msk [vmem:[#allocation2] sm:$0xff] %vm285, %v282
    // Predicated region
    $region30: #{tpu_custom_call.1} parent=1 // pred_check
      _
    $region31: #{tpu_custom_call.1} parent=1 // pred_check_branch
      %288 = sbr.rel (0) target = $region33
    $region32: #{tpu_custom_call.1} parent=1 // pred_region
      %s290 = ssub.s32 128, 128
      %291 = vsyncadd [#allocation3], %s290
      %s293 = sshll.u32 [#allocation2], 4
      %s294 = int_to_ptr.vmem [resolvable:$true] %s293
      %296 = dma.vmem_to_hbm [thread:$0]  %s294, 128, %s7, [#allocation3]
    $region33: #{tpu_custom_call.1} parent=1 // pred_fallthru
      _
    // Predicated region
    $region34: #{tpu_custom_call.1} parent=1 // pred_check
      _
    $region35: #{tpu_custom_call.1} parent=1 // pred_check_branch
      %298 = sbr.rel (0) target = $region37
    $region36: #{tpu_custom_call.1} parent=1 // pred_region
      %299 = dma.done [#allocation3], 128
    $region37: #{tpu_custom_call.1} parent=1 // pred_fallthru
      _
    %300 = vsyncpa [#allocation3], 1

</llo_original>
